<compile_context>
chip_gen: v5e
topology: v5e:2x2
jax: 0.10.0
libtpu: 0.0.40
codegen_flags: <defaults>
</compile_context>

<pallas_src>
import numpy as np
import jax
import jax.numpy as jnp
from jax.experimental import pallas as pl
from jax.experimental.pallas import tpu as pltpu


def _silu(x):
    return x * jax.nn.sigmoid(x)


def _round_up(x, m):
    return ((x + m - 1) // m) * m


def _flat_params_T(p):
    """PyTorch-style ((W1,b1),(W2,b2),(W3,b3)) -> pre-transposed flat list."""
    (w1, b1), (w2, b2), (w3, b3) = p
    return [w1.T, b1.reshape(1, -1), w2.T, b2.reshape(1, -1), w3.T, b3.reshape(1, -1)]


# ---------------------------------------------------------------------------
# Kernel 1: fused hypernetworks.
#   grid axis j tiles the hyper_net output columns (out_dim*in_dim, padded).
#   hyper_gate / hyper_bias (tiny) run once under pl.when(j == 0).
# ---------------------------------------------------------------------------
def _hyper_fused_kernel(c_ref, t_ref,
                        nw1, nb1, nw2, nb2, nw3, nb3,
                        gw1, gb1, gw2, gb2, gw3, gb3,
                        hw1, hb1, hw2, hb2, hw3, hb3,
                        w_ref, a_ref, b_ref):
    # hyper_net hidden is tiny (n_batch x hidden); recompute per column tile.
    h = _silu(jnp.dot(c_ref[...], nw1[...], preferred_element_type=jnp.float32) + nb1[...])
    h = _silu(jnp.dot(h, nw2[...], preferred_element_type=jnp.float32) + nb2[...])
    w_ref[...] = (jnp.dot(h, nw3[...], preferred_element_type=jnp.float32)
                  + nb3[...]).astype(w_ref.dtype)

    @pl.when(pl.program_id(0) == 0)
    def _():
        t = t_ref[...]
        g = _silu(jnp.dot(t, gw1[...], preferred_element_type=jnp.float32) + gb1[...])
        g = _silu(jnp.dot(g, gw2[...], preferred_element_type=jnp.float32) + gb2[...])
        a_ref[...] = (jnp.dot(g, gw3[...], preferred_element_type=jnp.float32)
                      + gb3[...]).astype(a_ref.dtype)
        u = _silu(jnp.dot(t, hw1[...], preferred_element_type=jnp.float32) + hb1[...])
        u = _silu(jnp.dot(u, hw2[...], preferred_element_type=jnp.float32) + hb2[...])
        b_ref[...] = (jnp.dot(u, hw3[...], preferred_element_type=jnp.float32)
                      + hb3[...]).astype(b_ref.dtype)


def hyper_weights(c, t2, net_params, gate_params, bias_params, *, wcol_tile=512):
    """One fused pallas_call -> (W_flat (n_batch, out_dim*in_dim), a, b)."""
    n_batch = c.shape[0]
    out_dim = gate_params[2][0].shape[0]
    hid = net_params[2][0].shape[1]
    width = net_params[2][0].shape[0]            # out_dim * in_dim

    # Column-tile the (only potentially large) hyper_net output so VMEM stays
    # bounded on v7x (64 MiB physical / 32 MiB scoped default).
    tn = min(wcol_tile, _round_up(width, 128))
    width_pad = _round_up(width, tn)
    n_wt = width_pad // tn

    nP = _flat_params_T(net_params)
    gP = _flat_params_T(gate_params)
    hP = _flat_params_T(bias_params)
    nP[4] = jnp.pad(nP[4], ((0, 0), (0, width_pad - width)))   # (hid, width_pad)
    nP[5] = jnp.pad(nP[5], ((0, 0), (0, width_pad - width)))   # (1,   width_pad)

    def full(shape):
        return pl.BlockSpec(shape, lambda j: tuple(0 for _ in shape))

    in_specs = [
        full(c.shape), full(t2.shape),
        full(nP[0].shape), full(nP[1].shape), full(nP[2].shape), full(nP[3].shape),
        pl.BlockSpec((hid, tn), lambda j: (0, j)),
        pl.BlockSpec((1, tn), lambda j: (0, j)),
        full(gP[0].shape), full(gP[1].shape), full(gP[2].shape), full(gP[3].shape),
        full(gP[4].shape), full(gP[5].shape),
        full(hP[0].shape), full(hP[1].shape), full(hP[2].shape), full(hP[3].shape),
        full(hP[4].shape), full(hP[5].shape),
    ]
    out_specs = (
        pl.BlockSpec((n_batch, tn), lambda j: (0, j)),
        pl.BlockSpec((n_batch, out_dim), lambda j: (0, 0)),
        pl.BlockSpec((n_batch, out_dim), lambda j: (0, 0)),
    )

    w_flat, a, b = pl.pallas_call(
        _hyper_fused_kernel,
        out_shape=(jax.ShapeDtypeStruct((n_batch, width_pad), jnp.float32),
                   jax.ShapeDtypeStruct((n_batch, out_dim), jnp.float32),
                   jax.ShapeDtypeStruct((n_batch, out_dim), jnp.float32)),
        grid=(n_wt,),
        in_specs=in_specs,
        out_specs=out_specs,
        compiler_params=pltpu.CompilerParams(
            # a/b are only written on step 0 with a constant output block;
            # keep this axis on a single core.
            dimension_semantics=("arbitrary",)),
    )(c, t2, *nP, *gP, *hP)
    return w_flat[:, :width], a, b


# ---------------------------------------------------------------------------
# Kernel 2 (hot path): per-segment gated matmul, non-transposed.
#   out[tile] = a[g] * (x[tile] @ W[g].T) + b[g]
# 1-D grid over row tiles; segment id per tile comes from scalar prefetch.
# ---------------------------------------------------------------------------
def _concat_squash_kernel(seg_ref, x_ref, wT_ref, ab_ref, o_ref):
    del seg_ref  # only consumed by the index_maps
    # (tm, in_dim) @ (in_dim, out_dim) -> (tm, out_dim), f32 accumulation.
    y = jnp.dot(x_ref[...], wT_ref[...], preferred_element_type=jnp.float32)
    o_ref[...] = (ab_ref[0:1, :] * y + ab_ref[1:2, :]).astype(o_ref.dtype)


def hyper_concat_squash_apply(x, W, a, b, seg_sizes, *, tm=512,
                              matmul_dtype=jnp.float32):
    """x: (n_total, in_dim); W: (n_batch, out_dim, in_dim); a,b: (n_batch, out_dim).
    seg_sizes: static Python list of consecutive segment sizes (sum == n_total)."""
    n_total, in_dim = x.shape
    n_batch, out_dim, _ = W.shape
    assert len(seg_sizes) == n_batch and sum(seg_sizes) == n_total

    # Cap the row tile at the 128-rounded largest segment: bounds per-segment
    # padding waste while keeping lane/sublane-friendly multiples of 128, and
    # leaves >= 2 grid tiles so v7x's two TensorCores both get work.
    tm = max(128, min(tm, _round_up(max(seg_sizes), 128)))

    # ---- static (host-side) padding plan: each segment padded to a tile multiple
    pad_sizes = [_round_up(s, tm) for s in seg_sizes]
    n_pad = sum(pad_sizes)
    n_tiles = n_pad // tm
    src_idx = np.zeros(n_pad, dtype=np.int32)     # padded row -> source row
    keep_idx = np.zeros(n_total, dtype=np.int32)  # original row -> padded row
    tile_seg = np.zeros(n_tiles, dtype=np.int32)  # row tile -> segment id
    off_o = off_p = t0 = 0
    for i, (s, ps) in enumerate(zip(seg_sizes, pad_sizes)):
        src_idx[off_p:off_p + s] = np.arange(off_o, off_o + s)
        keep_idx[off_o:off_o + s] = np.arange(off_p, off_p + s)
        tile_seg[t0:t0 + ps // tm] = i
        off_o += s
        off_p += ps
        t0 += ps // tm

    # ---- wrapper plumbing: one row gather (inserts inter-segment padding, no
    # transpose) and operand casts.  bf16 MXU operands halve HBM traffic on
    # v6e/v7x; the a*y+b epilogue and stored output stay f32.
    x_pad = x[jnp.asarray(src_idx)].astype(matmul_dtype)            # (n_pad, in_dim)
    wT = jnp.transpose(W, (0, 2, 1)).astype(matmul_dtype)           # (n_batch, in_dim, out_dim)
    ab = jnp.stack([a, b], axis=1)                                  # (n_batch, 2, out_dim)

    # TODO(synk): folding the final un-pad gather into the out_spec (per-tile
    # compact element offsets) would need overlapping/ordered output writes;
    # kept as a single wrapper gather for robustness.
    out_pad = pl.pallas_call(
        _concat_squash_kernel,
        out_shape=jax.ShapeDtypeStruct((n_pad, out_dim), jnp.float32),
        grid_spec=pltpu.PrefetchScalarGridSpec(
            num_scalar_prefetch=1,
            grid=(n_tiles,),
            in_specs=[
                pl.BlockSpec((tm, in_dim), lambda j, seg: (j, 0)),              # x tile
                pl.BlockSpec((pl.Squeezed(), in_dim, out_dim),                  # W[seg].T
                             lambda j, seg: (seg[j], 0, 0)),
                pl.BlockSpec((pl.Squeezed(), 2, out_dim),                       # [a;b][seg]
                             lambda j, seg: (seg[j], 0, 0)),
            ],
            out_specs=pl.BlockSpec((tm, out_dim), lambda j, seg: (j, 0)),
        ),
        compiler_params=pltpu.CompilerParams(
            dimension_semantics=("parallel",)),
    )(jnp.asarray(tile_seg), x_pad, wT, ab)

    # drop padded rows (one gather pass, no transpose)
    return out_pad[jnp.asarray(keep_idx)]


# ---------------------------------------------------------------------------
# Parameter init + full forward (glue in plain JAX)
# ---------------------------------------------------------------------------
def init_linear(key, in_d, out_d):
    kw, kb = jax.random.split(key)
    scale = 1.0 / jnp.sqrt(jnp.float32(in_d))
    w = jax.random.uniform(kw, (out_d, in_d), jnp.float32, -scale, scale)
    b = jax.random.uniform(kb, (out_d,), jnp.float32, -scale, scale)
    return w, b


def init_mlp(key, in_d, hid, out_d):
    k1, k2, k3 = jax.random.split(key, 3)
    return (init_linear(k1, in_d, hid),
            init_linear(k2, hid, hid),
            init_linear(k3, hid, out_d))


def init_hyper_concat_squash(key, in_dim, out_dim, context_dim, t_dim, hidden_dim):
    kb, kg, kn = jax.random.split(key, 3)
    return {
        "hyper_bias": init_mlp(kb, t_dim, hidden_dim, out_dim),
        "hyper_gate": init_mlp(kg, t_dim, hidden_dim, out_dim),
        "hyper_net": init_mlp(kn, context_dim, hidden_dim, out_dim * in_dim),
    }


def hyper_concat_squash_forward(params, x, c, t, seg_sizes, *,
                                in_dim, out_dim, t_dim, tm=512,
                                matmul_dtype=jnp.float32):
    n_batch = c.shape[0]
    t2 = t.reshape(n_batch, t_dim)
    w_flat, a, b = hyper_weights(c, t2, params["hyper_net"],
                                 params["hyper_gate"], params["hyper_bias"])
    W = w_flat.reshape(n_batch, out_dim, in_dim)
    return hyper_concat_squash_apply(x, W, a, b, seg_sizes, tm=tm,
                                     matmul_dtype=matmul_dtype)


# ---------------------------------------------------------------------------
# Pure-JAX reference for verification
# ---------------------------------------------------------------------------
def _mlp_ref(x, p):
    (w1, b1), (w2, b2), (w3, b3) = p
    h = jax.nn.silu(x @ w1.T + b1)
    h = jax.nn.silu(h @ w2.T + b2)
    return h @ w3.T + b3


def reference_forward(params, x, c, t, seg_sizes, *, in_dim, out_dim, t_dim):
    n_batch = c.shape[0]
    W = _mlp_ref(c, params["hyper_net"]).reshape(n_batch, out_dim, in_dim)
    t2 = t.reshape(n_batch, t_dim)
    a = _mlp_ref(t2, params["hyper_gate"])
    b = _mlp_ref(t2, params["hyper_bias"])
    batch = jnp.concatenate(
        [jnp.full((s,), i, jnp.int32) for i, s in enumerate(seg_sizes)])
    return a[batch] * jnp.einsum("nd,nod->no", x, W[batch]) + b[batch]


if __name__ == "__main__":
    in_dim, out_dim, context_dim, t_dim, hidden_dim = 8, 16, 4, 4, 32
    seg_sizes = [10, 14]                 # consecutive segments, as in the module
    n_total = sum(seg_sizes)             # 24 rows
    n_batch = len(seg_sizes)

    key = jax.random.PRNGKey(0)
    kp, kx, kc, kt = jax.random.split(key, 4)

    params = init_hyper_concat_squash(kp, in_dim, out_dim, context_dim, t_dim, hidden_dim)
    x = jax.random.normal(kx, (n_total, in_dim), jnp.float32)
    c = jax.random.normal(kc, (n_batch, context_dim), jnp.float32)
    t = jax.random.normal(kt, (n_batch, t_dim), jnp.float32)

    ref = reference_forward(
        params, x, c, t, seg_sizes, in_dim=in_dim, out_dim=out_dim, t_dim=t_dim)

    # f32 MXU path (matches reference tightly)
    out = hyper_concat_squash_forward(
        params, x, c, t, seg_sizes, in_dim=in_dim, out_dim=out_dim, t_dim=t_dim,
        matmul_dtype=jnp.float32)
    out = jax.block_until_ready(out)
    assert out.shape == (n_total, out_dim)
    assert jnp.allclose(out, ref, atol=1e-4, rtol=1e-4), "f32 mismatch vs reference"

    # bf16 MXU-operand path (the HBM-traffic win on v6e/v7x); f32 accumulation,
    # so only small drift vs the f32 reference is expected.
    out_bf16 = hyper_concat_squash_forward(
        params, x, c, t, seg_sizes, in_dim=in_dim, out_dim=out_dim, t_dim=t_dim,
        matmul_dtype=jnp.bfloat16)
    out_bf16 = jax.block_until_ready(out_bf16)
    assert out_bf16.shape == (n_total, out_dim)
    assert jnp.allclose(out_bf16, ref, atol=5e-2, rtol=5e-2), "bf16 mismatch vs reference"

    print("KERNEL_OK")
</pallas_src>

<mosaic_0001>
module attributes {stable_mosaic.version = 11 : i64} {
  func.func @_hyper_fused_kernel(%arg0: i32, %arg1: memref<2x4xf32, #tpu.memory_space<vmem>>, %arg2: memref<2x4xf32, #tpu.memory_space<vmem>>, %arg3: memref<4x32xf32, #tpu.memory_space<vmem>>, %arg4: memref<1x32xf32, #tpu.memory_space<vmem>>, %arg5: memref<32x32xf32, #tpu.memory_space<vmem>>, %arg6: memref<1x32xf32, #tpu.memory_space<vmem>>, %arg7: memref<32x128xf32, #tpu.memory_space<vmem>>, %arg8: memref<1x128xf32, #tpu.memory_space<vmem>>, %arg9: memref<4x32xf32, #tpu.memory_space<vmem>>, %arg10: memref<1x32xf32, #tpu.memory_space<vmem>>, %arg11: memref<32x32xf32, #tpu.memory_space<vmem>>, %arg12: memref<1x32xf32, #tpu.memory_space<vmem>>, %arg13: memref<32x16xf32, #tpu.memory_space<vmem>>, %arg14: memref<1x16xf32, #tpu.memory_space<vmem>>, %arg15: memref<4x32xf32, #tpu.memory_space<vmem>>, %arg16: memref<1x32xf32, #tpu.memory_space<vmem>>, %arg17: memref<32x32xf32, #tpu.memory_space<vmem>>, %arg18: memref<1x32xf32, #tpu.memory_space<vmem>>, %arg19: memref<32x16xf32, #tpu.memory_space<vmem>>, %arg20: memref<1x16xf32, #tpu.memory_space<vmem>>, %arg21: memref<2x128xf32, #tpu.memory_space<vmem>>, %arg22: memref<2x16xf32, #tpu.memory_space<vmem>>, %arg23: memref<2x16xf32, #tpu.memory_space<vmem>>) attributes {dimension_semantics = [#tpu.dimension_semantics<arbitrary>], iteration_bounds = array<i64: 1>, scalar_prefetch = 0 : i64, scratch_operands = 0 : i64, tpu.core_type = #tpu.core_type<tc>, window_params = [{pipeline_mode = #tpu.pipeline_mode<synchronous>, transform_indices = @transform_0, window_bounds = array<i64: 2, 4>}, {pipeline_mode = #tpu.pipeline_mode<synchronous>, transform_indices = @transform_1, window_bounds = array<i64: 2, 4>}, {pipeline_mode = #tpu.pipeline_mode<synchronous>, transform_indices = @transform_2, window_bounds = array<i64: 4, 32>}, {pipeline_mode = #tpu.pipeline_mode<synchronous>, transform_indices = @transform_3, window_bounds = array<i64: 1, 32>}, {pipeline_mode = #tpu.pipeline_mode<synchronous>, transform_indices = @transform_4, window_bounds = array<i64: 32, 32>}, {pipeline_mode = #tpu.pipeline_mode<synchronous>, transform_indices = @transform_5, window_bounds = array<i64: 1, 32>}, {transform_indices = @transform_6, window_bounds = array<i64: 32, 128>}, {transform_indices = @transform_7, window_bounds = array<i64: 1, 128>}, {pipeline_mode = #tpu.pipeline_mode<synchronous>, transform_indices = @transform_8, window_bounds = array<i64: 4, 32>}, {pipeline_mode = #tpu.pipeline_mode<synchronous>, transform_indices = @transform_9, window_bounds = array<i64: 1, 32>}, {pipeline_mode = #tpu.pipeline_mode<synchronous>, transform_indices = @transform_10, window_bounds = array<i64: 32, 32>}, {pipeline_mode = #tpu.pipeline_mode<synchronous>, transform_indices = @transform_11, window_bounds = array<i64: 1, 32>}, {pipeline_mode = #tpu.pipeline_mode<synchronous>, transform_indices = @transform_12, window_bounds = array<i64: 32, 16>}, {pipeline_mode = #tpu.pipeline_mode<synchronous>, transform_indices = @transform_13, window_bounds = array<i64: 1, 16>}, {pipeline_mode = #tpu.pipeline_mode<synchronous>, transform_indices = @transform_14, window_bounds = array<i64: 4, 32>}, {pipeline_mode = #tpu.pipeline_mode<synchronous>, transform_indices = @transform_15, window_bounds = array<i64: 1, 32>}, {pipeline_mode = #tpu.pipeline_mode<synchronous>, transform_indices = @transform_16, window_bounds = array<i64: 32, 32>}, {pipeline_mode = #tpu.pipeline_mode<synchronous>, transform_indices = @transform_17, window_bounds = array<i64: 1, 32>}, {pipeline_mode = #tpu.pipeline_mode<synchronous>, transform_indices = @transform_18, window_bounds = array<i64: 32, 16>}, {pipeline_mode = #tpu.pipeline_mode<synchronous>, transform_indices = @transform_19, window_bounds = array<i64: 1, 16>}, {transform_indices = @transform_20, window_bounds = array<i64: 2, 128>}, {pipeline_mode = #tpu.pipeline_mode<synchronous>, transform_indices = @transform_21, window_bounds = array<i64: 2, 16>}, {pipeline_mode = #tpu.pipeline_mode<synchronous>, transform_indices = @transform_22, window_bounds = array<i64: 2, 16>}]} {
    %c0 = arith.constant 0 : index
    %c0_0 = arith.constant 0 : index
    %0 = vector.load %arg1[%c0, %c0_0] : memref<2x4xf32, #tpu.memory_space<vmem>>, vector<2x4xf32>
    %c0_1 = arith.constant 0 : index
    %c0_2 = arith.constant 0 : index
    %1 = vector.load %arg3[%c0_1, %c0_2] : memref<4x32xf32, #tpu.memory_space<vmem>>, vector<4x32xf32>
    %cst = arith.constant dense<0.000000e+00> : vector<2x32xf32>
    %2 = tpu.matmul %0, %1, %cst {dimension_numbers = #tpu.dot_dimension_numbers<[1], [0], [0], [1], [0, 0, 1, 1], [], []>} : vector<2x4xf32>, vector<4x32xf32>, vector<2x32xf32> -> vector<2x32xf32>
    %c0_3 = arith.constant 0 : index
    %c0_4 = arith.constant 0 : index
    %3 = vector.load %arg4[%c0_3, %c0_4] : memref<1x32xf32, #tpu.memory_space<vmem>>, vector<1x32xf32>
    %4 = vector.broadcast %3 : vector<1x32xf32> to vector<2x32xf32>
    %5 = arith.addf %2, %4 : vector<2x32xf32>
    %6 = arith.negf %5 : vector<2x32xf32>
    %7 = math.exp %6 : vector<2x32xf32>
    %cst_5 = arith.constant 1.000000e+00 : f32
    %8 = vector.broadcast %cst_5 : f32 to vector<2x32xf32>
    %9 = arith.addf %8, %7 : vector<2x32xf32>
    %10 = arith.divf %8, %9 : vector<2x32xf32>
    %11 = arith.mulf %5, %10 : vector<2x32xf32>
    %c0_6 = arith.constant 0 : index
    %c0_7 = arith.constant 0 : index
    %12 = vector.load %arg5[%c0_6, %c0_7] : memref<32x32xf32, #tpu.memory_space<vmem>>, vector<32x32xf32>
    %cst_8 = arith.constant dense<0.000000e+00> : vector<2x32xf32>
    %13 = tpu.matmul %11, %12, %cst_8 {dimension_numbers = #tpu.dot_dimension_numbers<[1], [0], [0], [1], [0, 0, 1, 1], [], []>} : vector<2x32xf32>, vector<32x32xf32>, vector<2x32xf32> -> vector<2x32xf32>
    %c0_9 = arith.constant 0 : index
    %c0_10 = arith.constant 0 : index
    %14 = vector.load %arg6[%c0_9, %c0_10] : memref<1x32xf32, #tpu.memory_space<vmem>>, vector<1x32xf32>
    %15 = vector.broadcast %14 : vector<1x32xf32> to vector<2x32xf32>
    %16 = arith.addf %13, %15 : vector<2x32xf32>
    %17 = arith.negf %16 : vector<2x32xf32>
    %18 = math.exp %17 : vector<2x32xf32>
    %cst_11 = arith.constant 1.000000e+00 : f32
    %19 = vector.broadcast %cst_11 : f32 to vector<2x32xf32>
    %20 = arith.addf %19, %18 : vector<2x32xf32>
    %21 = arith.divf %19, %20 : vector<2x32xf32>
    %22 = arith.mulf %16, %21 : vector<2x32xf32>
    %c0_12 = arith.constant 0 : index
    %c0_13 = arith.constant 0 : index
    %23 = vector.load %arg7[%c0_12, %c0_13] : memref<32x128xf32, #tpu.memory_space<vmem>>, vector<32x128xf32>
    %cst_14 = arith.constant dense<0.000000e+00> : vector<2x128xf32>
    %24 = tpu.matmul %22, %23, %cst_14 {dimension_numbers = #tpu.dot_dimension_numbers<[1], [0], [0], [1], [0, 0, 1, 1], [], []>} : vector<2x32xf32>, vector<32x128xf32>, vector<2x128xf32> -> vector<2x128xf32>
    %c0_15 = arith.constant 0 : index
    %c0_16 = arith.constant 0 : index
    %25 = vector.load %arg8[%c0_15, %c0_16] : memref<1x128xf32, #tpu.memory_space<vmem>>, vector<1x128xf32>
    %26 = vector.broadcast %25 : vector<1x128xf32> to vector<2x128xf32>
    %27 = arith.addf %24, %26 : vector<2x128xf32>
    %c0_17 = arith.constant 0 : index
    %c0_18 = arith.constant 0 : index
    %28 = vector.load %arg21[%c0_17, %c0_18] : memref<2x128xf32, #tpu.memory_space<vmem>>, vector<2x128xf32>
    tpu.vector_store %arg21[%c0_17, %c0_18], %27 {strides = array<i32>} : memref<2x128xf32, #tpu.memory_space<vmem>>, vector<2x128xf32>,
    %c0_i32 = arith.constant 0 : i32
    %29 = arith.cmpi eq, %arg0, %c0_i32 : i32
    %30 = arith.extui %29 : i1 to i32
    %c0_i32_19 = arith.constant 0 : i32
    %31 = arith.cmpi ne, %30, %c0_i32_19 : i32
    scf.if %31 {
      %c0_20 = arith.constant 0 : index
      %c0_21 = arith.constant 0 : index
      %32 = vector.load %arg2[%c0_20, %c0_21] : memref<2x4xf32, #tpu.memory_space<vmem>>, vector<2x4xf32>
      %c0_22 = arith.constant 0 : index
      %c0_23 = arith.constant 0 : index
      %33 = vector.load %arg9[%c0_22, %c0_23] : memref<4x32xf32, #tpu.memory_space<vmem>>, vector<4x32xf32>
      %cst_24 = arith.constant dense<0.000000e+00> : vector<2x32xf32>
      %34 = tpu.matmul %32, %33, %cst_24 {dimension_numbers = #tpu.dot_dimension_numbers<[1], [0], [0], [1], [0, 0, 1, 1], [], []>} : vector<2x4xf32>, vector<4x32xf32>, vector<2x32xf32> -> vector<2x32xf32>
      %c0_25 = arith.constant 0 : index
      %c0_26 = arith.constant 0 : index
      %35 = vector.load %arg10[%c0_25, %c0_26] : memref<1x32xf32, #tpu.memory_space<vmem>>, vector<1x32xf32>
      %36 = vector.broadcast %35 : vector<1x32xf32> to vector<2x32xf32>
      %37 = arith.addf %34, %36 : vector<2x32xf32>
      %38 = arith.negf %37 : vector<2x32xf32>
      %39 = math.exp %38 : vector<2x32xf32>
      %cst_27 = arith.constant 1.000000e+00 : f32
      %40 = vector.broadcast %cst_27 : f32 to vector<2x32xf32>
      %41 = arith.addf %40, %39 : vector<2x32xf32>
      %42 = arith.divf %40, %41 : vector<2x32xf32>
      %43 = arith.mulf %37, %42 : vector<2x32xf32>
      %c0_28 = arith.constant 0 : index
      %c0_29 = arith.constant 0 : index
      %44 = vector.load %arg11[%c0_28, %c0_29] : memref<32x32xf32, #tpu.memory_space<vmem>>, vector<32x32xf32>
      %cst_30 = arith.constant dense<0.000000e+00> : vector<2x32xf32>
      %45 = tpu.matmul %43, %44, %cst_30 {dimension_numbers = #tpu.dot_dimension_numbers<[1], [0], [0], [1], [0, 0, 1, 1], [], []>} : vector<2x32xf32>, vector<32x32xf32>, vector<2x32xf32> -> vector<2x32xf32>
      %c0_31 = arith.constant 0 : index
      %c0_32 = arith.constant 0 : index
      %46 = vector.load %arg12[%c0_31, %c0_32] : memref<1x32xf32, #tpu.memory_space<vmem>>, vector<1x32xf32>
      %47 = vector.broadcast %46 : vector<1x32xf32> to vector<2x32xf32>
      %48 = arith.addf %45, %47 : vector<2x32xf32>
      %49 = arith.negf %48 : vector<2x32xf32>
      %50 = math.exp %49 : vector<2x32xf32>
      %cst_33 = arith.constant 1.000000e+00 : f32
      %51 = vector.broadcast %cst_33 : f32 to vector<2x32xf32>
      %52 = arith.addf %51, %50 : vector<2x32xf32>
      %53 = arith.divf %51, %52 : vector<2x32xf32>
      %54 = arith.mulf %48, %53 : vector<2x32xf32>
      %c0_34 = arith.constant 0 : index
      %c0_35 = arith.constant 0 : index
      %55 = vector.load %arg13[%c0_34, %c0_35] : memref<32x16xf32, #tpu.memory_space<vmem>>, vector<32x16xf32>
      %cst_36 = arith.constant dense<0.000000e+00> : vector<2x16xf32>
      %56 = tpu.matmul %54, %55, %cst_36 {dimension_numbers = #tpu.dot_dimension_numbers<[1], [0], [0], [1], [0, 0, 1, 1], [], []>} : vector<2x32xf32>, vector<32x16xf32>, vector<2x16xf32> -> vector<2x16xf32>
      %c0_37 = arith.constant 0 : index
      %c0_38 = arith.constant 0 : index
      %57 = vector.load %arg14[%c0_37, %c0_38] : memref<1x16xf32, #tpu.memory_space<vmem>>, vector<1x16xf32>
      %58 = vector.broadcast %57 : vector<1x16xf32> to vector<2x16xf32>
      %59 = arith.addf %56, %58 : vector<2x16xf32>
      %c0_39 = arith.constant 0 : index
      %c0_40 = arith.constant 0 : index
      %60 = vector.load %arg22[%c0_39, %c0_40] : memref<2x16xf32, #tpu.memory_space<vmem>>, vector<2x16xf32>
      tpu.vector_store %arg22[%c0_39, %c0_40], %59 {strides = array<i32>} : memref<2x16xf32, #tpu.memory_space<vmem>>, vector<2x16xf32>,
      %c0_41 = arith.constant 0 : index
      %c0_42 = arith.constant 0 : index
      %61 = vector.load %arg15[%c0_41, %c0_42] : memref<4x32xf32, #tpu.memory_space<vmem>>, vector<4x32xf32>
      %cst_43 = arith.constant dense<0.000000e+00> : vector<2x32xf32>
      %62 = tpu.matmul %32, %61, %cst_43 {dimension_numbers = #tpu.dot_dimension_numbers<[1], [0], [0], [1], [0, 0, 1, 1], [], []>} : vector<2x4xf32>, vector<4x32xf32>, vector<2x32xf32> -> vector<2x32xf32>
      %c0_44 = arith.constant 0 : index
      %c0_45 = arith.constant 0 : index
      %63 = vector.load %arg16[%c0_44, %c0_45] : memref<1x32xf32, #tpu.memory_space<vmem>>, vector<1x32xf32>
      %64 = vector.broadcast %63 : vector<1x32xf32> to vector<2x32xf32>
      %65 = arith.addf %62, %64 : vector<2x32xf32>
      %66 = arith.negf %65 : vector<2x32xf32>
      %67 = math.exp %66 : vector<2x32xf32>
      %cst_46 = arith.constant 1.000000e+00 : f32
      %68 = vector.broadcast %cst_46 : f32 to vector<2x32xf32>
      %69 = arith.addf %68, %67 : vector<2x32xf32>
      %70 = arith.divf %68, %69 : vector<2x32xf32>
      %71 = arith.mulf %65, %70 : vector<2x32xf32>
      %c0_47 = arith.constant 0 : index
      %c0_48 = arith.constant 0 : index
      %72 = vector.load %arg17[%c0_47, %c0_48] : memref<32x32xf32, #tpu.memory_space<vmem>>, vector<32x32xf32>
      %cst_49 = arith.constant dense<0.000000e+00> : vector<2x32xf32>
      %73 = tpu.matmul %71, %72, %cst_49 {dimension_numbers = #tpu.dot_dimension_numbers<[1], [0], [0], [1], [0, 0, 1, 1], [], []>} : vector<2x32xf32>, vector<32x32xf32>, vector<2x32xf32> -> vector<2x32xf32>
      %c0_50 = arith.constant 0 : index
      %c0_51 = arith.constant 0 : index
      %74 = vector.load %arg18[%c0_50, %c0_51] : memref<1x32xf32, #tpu.memory_space<vmem>>, vector<1x32xf32>
      %75 = vector.broadcast %74 : vector<1x32xf32> to vector<2x32xf32>
      %76 = arith.addf %73, %75 : vector<2x32xf32>
      %77 = arith.negf %76 : vector<2x32xf32>
      %78 = math.exp %77 : vector<2x32xf32>
      %cst_52 = arith.constant 1.000000e+00 : f32
      %79 = vector.broadcast %cst_52 : f32 to vector<2x32xf32>
      %80 = arith.addf %79, %78 : vector<2x32xf32>
      %81 = arith.divf %79, %80 : vector<2x32xf32>
      %82 = arith.mulf %76, %81 : vector<2x32xf32>
      %c0_53 = arith.constant 0 : index
      %c0_54 = arith.constant 0 : index
      %83 = vector.load %arg19[%c0_53, %c0_54] : memref<32x16xf32, #tpu.memory_space<vmem>>, vector<32x16xf32>
      %cst_55 = arith.constant dense<0.000000e+00> : vector<2x16xf32>
      %84 = tpu.matmul %82, %83, %cst_55 {dimension_numbers = #tpu.dot_dimension_numbers<[1], [0], [0], [1], [0, 0, 1, 1], [], []>} : vector<2x32xf32>, vector<32x16xf32>, vector<2x16xf32> -> vector<2x16xf32>
      %c0_56 = arith.constant 0 : index
      %c0_57 = arith.constant 0 : index
      %85 = vector.load %arg20[%c0_56, %c0_57] : memref<1x16xf32, #tpu.memory_space<vmem>>, vector<1x16xf32>
      %86 = vector.broadcast %85 : vector<1x16xf32> to vector<2x16xf32>
      %87 = arith.addf %84, %86 : vector<2x16xf32>
      %c0_58 = arith.constant 0 : index
      %c0_59 = arith.constant 0 : index
      %88 = vector.load %arg23[%c0_58, %c0_59] : memref<2x16xf32, #tpu.memory_space<vmem>>, vector<2x16xf32>
      tpu.vector_store %arg23[%c0_58, %c0_59], %87 {strides = array<i32>} : memref<2x16xf32, #tpu.memory_space<vmem>>, vector<2x16xf32>,
    } else {
    }
    return
  }
  func.func @transform_0(%arg0: i32) -> (i32, i32) {
    %c0_i32 = arith.constant 0 : i32
    %c0_i32_0 = arith.constant 0 : i32
    %c0_i32_1 = arith.constant 0 : i32
    return %c0_i32, %c0_i32_0 : i32, i32
  }
  func.func @transform_1(%arg0: i32) -> (i32, i32) {
    %c0_i32 = arith.constant 0 : i32
    %c0_i32_0 = arith.constant 0 : i32
    %c0_i32_1 = arith.constant 0 : i32
    return %c0_i32, %c0_i32_0 : i32, i32
  }
  func.func @transform_2(%arg0: i32) -> (i32, i32) {
    %c0_i32 = arith.constant 0 : i32
    %c0_i32_0 = arith.constant 0 : i32
    %c0_i32_1 = arith.constant 0 : i32
    return %c0_i32, %c0_i32_0 : i32, i32
  }
  func.func @transform_3(%arg0: i32) -> (i32, i32) {
    %c0_i32 = arith.constant 0 : i32
    %c0_i32_0 = arith.constant 0 : i32
    %c0_i32_1 = arith.constant 0 : i32
    return %c0_i32, %c0_i32_0 : i32, i32
  }
  func.func @transform_4(%arg0: i32) -> (i32, i32) {
    %c0_i32 = arith.constant 0 : i32
    %c0_i32_0 = arith.constant 0 : i32
    %c0_i32_1 = arith.constant 0 : i32
    return %c0_i32, %c0_i32_0 : i32, i32
  }
  func.func @transform_5(%arg0: i32) -> (i32, i32) {
    %c0_i32 = arith.constant 0 : i32
    %c0_i32_0 = arith.constant 0 : i32
    %c0_i32_1 = arith.constant 0 : i32
    return %c0_i32, %c0_i32_0 : i32, i32
  }
  func.func @transform_6(%arg0: i32) -> (i32, i32) {
    %c0_i32 = arith.constant 0 : i32
    %c0_i32_0 = arith.constant 0 : i32
    return %c0_i32, %arg0 : i32, i32
  }
  func.func @transform_7(%arg0: i32) -> (i32, i32) {
    %c0_i32 = arith.constant 0 : i32
    %c0_i32_0 = arith.constant 0 : i32
    return %c0_i32, %arg0 : i32, i32
  }
  func.func @transform_8(%arg0: i32) -> (i32, i32) {
    %c0_i32 = arith.constant 0 : i32
    %c0_i32_0 = arith.constant 0 : i32
    %c0_i32_1 = arith.constant 0 : i32
    return %c0_i32, %c0_i32_0 : i32, i32
  }
  func.func @transform_9(%arg0: i32) -> (i32, i32) {
    %c0_i32 = arith.constant 0 : i32
    %c0_i32_0 = arith.constant 0 : i32
    %c0_i32_1 = arith.constant 0 : i32
    return %c0_i32, %c0_i32_0 : i32, i32
  }
  func.func @transform_10(%arg0: i32) -> (i32, i32) {
    %c0_i32 = arith.constant 0 : i32
    %c0_i32_0 = arith.constant 0 : i32
    %c0_i32_1 = arith.constant 0 : i32
    return %c0_i32, %c0_i32_0 : i32, i32
  }
  func.func @transform_11(%arg0: i32) -> (i32, i32) {
    %c0_i32 = arith.constant 0 : i32
    %c0_i32_0 = arith.constant 0 : i32
    %c0_i32_1 = arith.constant 0 : i32
    return %c0_i32, %c0_i32_0 : i32, i32
  }
  func.func @transform_12(%arg0: i32) -> (i32, i32) {
    %c0_i32 = arith.constant 0 : i32
    %c0_i32_0 = arith.constant 0 : i32
    %c0_i32_1 = arith.constant 0 : i32
    return %c0_i32, %c0_i32_0 : i32, i32
  }
  func.func @transform_13(%arg0: i32) -> (i32, i32) {
    %c0_i32 = arith.constant 0 : i32
    %c0_i32_0 = arith.constant 0 : i32
    %c0_i32_1 = arith.constant 0 : i32
    return %c0_i32, %c0_i32_0 : i32, i32
  }
  func.func @transform_14(%arg0: i32) -> (i32, i32) {
    %c0_i32 = arith.constant 0 : i32
    %c0_i32_0 = arith.constant 0 : i32
    %c0_i32_1 = arith.constant 0 : i32
    return %c0_i32, %c0_i32_0 : i32, i32
  }
  func.func @transform_15(%arg0: i32) -> (i32, i32) {
    %c0_i32 = arith.constant 0 : i32
    %c0_i32_0 = arith.constant 0 : i32
    %c0_i32_1 = arith.constant 0 : i32
    return %c0_i32, %c0_i32_0 : i32, i32
  }
  func.func @transform_16(%arg0: i32) -> (i32, i32) {
    %c0_i32 = arith.constant 0 : i32
    %c0_i32_0 = arith.constant 0 : i32
    %c0_i32_1 = arith.constant 0 : i32
    return %c0_i32, %c0_i32_0 : i32, i32
  }
  func.func @transform_17(%arg0: i32) -> (i32, i32) {
    %c0_i32 = arith.constant 0 : i32
    %c0_i32_0 = arith.constant 0 : i32
    %c0_i32_1 = arith.constant 0 : i32
    return %c0_i32, %c0_i32_0 : i32, i32
  }
  func.func @transform_18(%arg0: i32) -> (i32, i32) {
    %c0_i32 = arith.constant 0 : i32
    %c0_i32_0 = arith.constant 0 : i32
    %c0_i32_1 = arith.constant 0 : i32
    return %c0_i32, %c0_i32_0 : i32, i32
  }
  func.func @transform_19(%arg0: i32) -> (i32, i32) {
    %c0_i32 = arith.constant 0 : i32
    %c0_i32_0 = arith.constant 0 : i32
    %c0_i32_1 = arith.constant 0 : i32
    return %c0_i32, %c0_i32_0 : i32, i32
  }
  func.func @transform_20(%arg0: i32) -> (i32, i32) {
    %c0_i32 = arith.constant 0 : i32
    %c0_i32_0 = arith.constant 0 : i32
    return %c0_i32, %arg0 : i32, i32
  }
  func.func @transform_21(%arg0: i32) -> (i32, i32) {
    %c0_i32 = arith.constant 0 : i32
    %c0_i32_0 = arith.constant 0 : i32
    %c0_i32_1 = arith.constant 0 : i32
    return %c0_i32, %c0_i32_0 : i32, i32
  }
  func.func @transform_22(%arg0: i32) -> (i32, i32) {
    %c0_i32 = arith.constant 0 : i32
    %c0_i32_0 = arith.constant 0 : i32
    %c0_i32_1 = arith.constant 0 : i32
    return %c0_i32, %c0_i32_0 : i32, i32
  }
}

</mosaic_0001>

<llo_original>
// kernel: tpu_custom_call.1
$region0: #{tpu_custom_call.1}
  #allocation0 [shape = 'u32[]', space=smem, size = 0x4, offset = 0x4, fixed_abs, tag = 'smem constant byte address 0x4 - core index']
  #allocation1 [shape = 'u32[72,128]{1,0:T(1,128)}', space=vmem, size = 0x9000, scoped, tag = 'internal scratch']
  %s0 = inlined_call_operand.vmem [shape: f32[2,4], index: 0, kind: input, shape index: {}]
  %s1 = inlined_call_operand.vmem [shape: f32[2,4], index: 1, kind: input, shape index: {}]
  %s2 = inlined_call_operand.vmem [shape: f32[4,32], index: 2, kind: input, shape index: {}]
  %s3 = inlined_call_operand.vmem [shape: f32[1,32], index: 3, kind: input, shape index: {}]
  %s4 = inlined_call_operand.vmem [shape: f32[32,32], index: 4, kind: input, shape index: {}]
  %s5 = inlined_call_operand.vmem [shape: f32[1,32], index: 5, kind: input, shape index: {}]
  %s6 = inlined_call_operand.vmem [shape: f32[32,128], index: 6, kind: input, shape index: {}]
  %s7 = inlined_call_operand.vmem [shape: f32[1,128], index: 7, kind: input, shape index: {}]
  %s8 = inlined_call_operand.vmem [shape: f32[4,32], index: 8, kind: input, shape index: {}]
  %s9 = inlined_call_operand.vmem [shape: f32[1,32], index: 9, kind: input, shape index: {}]
  %s10 = inlined_call_operand.hbm [shape: f32[32,32], index: 10, kind: input, shape index: {}]
  %s11 = inlined_call_operand.vmem [shape: f32[1,32], index: 11, kind: input, shape index: {}]
  %s12 = inlined_call_operand.vmem [shape: f32[32,16], index: 12, kind: input, shape index: {}]
  %s13 = inlined_call_operand.vmem [shape: f32[1,16], index: 13, kind: input, shape index: {}]
  %s14 = inlined_call_operand.vmem [shape: f32[4,32], index: 14, kind: input, shape index: {}]
  %s15 = inlined_call_operand.vmem [shape: f32[1,32], index: 15, kind: input, shape index: {}]
  %s16 = inlined_call_operand.hbm [shape: f32[32,32], index: 16, kind: input, shape index: {}]
  %s17 = inlined_call_operand.vmem [shape: f32[1,32], index: 17, kind: input, shape index: {}]
  %s18 = inlined_call_operand.vmem [shape: f32[32,16], index: 18, kind: input, shape index: {}]
  %s19 = inlined_call_operand.vmem [shape: f32[1,16], index: 19, kind: input, shape index: {}]
  %s20 = inlined_call_operand.hbm [shape: f32[2,128], index: 20, kind: output, shape index: {0}]
  %s21 = inlined_call_operand.hbm [shape: f32[2,16], index: 21, kind: output, shape index: {1}]
  %s22 = inlined_call_operand.hbm [shape: f32[2,16], index: 22, kind: output, shape index: {2}]
  %23 = xla_tuple %s20, %s21, %s22
  %s24 = sld [smem:[#allocation0]]
  $region118: #{tpu_custom_call.1} parent=0
    _
  %s26 = ssub.s32 1, %s24
  %s27 = scalar_select 0, %s26, %s24
  $region1: #{tpu_custom_call.1} parent=0
    #allocation2 [shape = 'u8[16384]{0}', space=vmem, size = 0x4000, scoped, tag = 'input window, operand 10, single buffered']
    #allocation3 [shape = 's32[1]{0}', space=sflag, size = 0x4, scoped, tag = 'scoped memory for tpu_custom_call.1']
    #allocation4 [shape = 's32[1]{0}', space=sflag, size = 0x4, scoped, tag = 'scoped memory for tpu_custom_call.1']
    #allocation5 [shape = 'u8[16384]{0}', space=vmem, size = 0x4000, scoped, tag = 'input window, operand 16, single buffered']
    #allocation6 [shape = 's32[1]{0}', space=sflag, size = 0x4, scoped, tag = 'scoped memory for tpu_custom_call.1']
    #allocation7 [shape = 'u8[1024]{0}', space=vmem, size = 0x400, scoped, tag = 'output window, operand 0, single buffered']
    #allocation8 [shape = 'u8[1024]{0}', space=vmem, size = 0x400, scoped, tag = 'output window, operand 1, single buffered']
    #allocation9 [shape = 's32[1]{0}', space=sflag, size = 0x4, scoped, tag = 'scoped memory for tpu_custom_call.1']
    #allocation10 [shape = 'u8[1024]{0}', space=vmem, size = 0x400, scoped, tag = 'output window, operand 2, single buffered']
    %28 = vsyncpa [#allocation3], 0
    %29 = vsyncpa [#allocation6], 0
    %30 = vsyncpa [#allocation4], 0
    %31 = vsyncpa [#allocation9], 0
    // Predicated region
    $region2: #{tpu_custom_call.1} parent=1 // pred_check
      _
    $region3: #{tpu_custom_call.1} parent=1 // pred_check_branch
      %33 = sbr.rel (0) target = $region5
    $region4: #{tpu_custom_call.1} parent=1 // pred_region
      _
    $region5: #{tpu_custom_call.1} parent=1 // pred_fallthru
      _
    // Predicated region
    $region6: #{tpu_custom_call.1} parent=1 // pred_check
      _
    $region7: #{tpu_custom_call.1} parent=1 // pred_check_branch
      %35 = sbr.rel (0) target = $region9
    $region8: #{tpu_custom_call.1} parent=1 // pred_region
      _
    $region9: #{tpu_custom_call.1} parent=1 // pred_fallthru
      _
    // Predicated region
    $region10: #{tpu_custom_call.1} parent=1 // pred_check
      _
    $region11: #{tpu_custom_call.1} parent=1 // pred_check_branch
      %37 = sbr.rel (0) target = $region13
    $region12: #{tpu_custom_call.1} parent=1 // pred_region
      _
    $region13: #{tpu_custom_call.1} parent=1 // pred_fallthru
      _
    // Predicated region
    $region14: #{tpu_custom_call.1} parent=1 // pred_check
      _
    $region15: #{tpu_custom_call.1} parent=1 // pred_check_branch
      %39 = sbr.rel (0) target = $region17
    $region16: #{tpu_custom_call.1} parent=1 // pred_region
      _
    $region17: #{tpu_custom_call.1} parent=1 // pred_fallthru
      _
    // Predicated region
    $region18: #{tpu_custom_call.1} parent=1 // pred_check
      _
    $region19: #{tpu_custom_call.1} parent=1 // pred_check_branch
      %41 = sbr.rel (0) target = $region21
    $region20: #{tpu_custom_call.1} parent=1 // pred_region
      _
    $region21: #{tpu_custom_call.1} parent=1 // pred_fallthru
      _
    // Predicated region
    $region22: #{tpu_custom_call.1} parent=1 // pred_check
      _
    $region23: #{tpu_custom_call.1} parent=1 // pred_check_branch
      %43 = sbr.rel (0) target = $region25
    $region24: #{tpu_custom_call.1} parent=1 // pred_region
      _
    $region25: #{tpu_custom_call.1} parent=1 // pred_fallthru
      _
    // Predicated region
    $region26: #{tpu_custom_call.1} parent=1 // pred_check
      _
    $region27: #{tpu_custom_call.1} parent=1 // pred_check_branch
      %45 = sbr.rel (0) target = $region29
    $region28: #{tpu_custom_call.1} parent=1 // pred_region
      _
    $region29: #{tpu_custom_call.1} parent=1 // pred_fallthru
      _
    // Predicated region
    $region30: #{tpu_custom_call.1} parent=1 // pred_check
      _
    $region31: #{tpu_custom_call.1} parent=1 // pred_check_branch
      %47 = sbr.rel (0) target = $region33
    $region32: #{tpu_custom_call.1} parent=1 // pred_region
      _
    $region33: #{tpu_custom_call.1} parent=1 // pred_fallthru
      _
    // Predicated region
    $region34: #{tpu_custom_call.1} parent=1 // pred_check
      _
    $region35: #{tpu_custom_call.1} parent=1 // pred_check_branch
      %49 = sbr.rel (0) target = $region37
    $region36: #{tpu_custom_call.1} parent=1 // pred_region
      _
    $region37: #{tpu_custom_call.1} parent=1 // pred_fallthru
      _
    // Predicated region
    $region38: #{tpu_custom_call.1} parent=1 // pred_check
      _
    $region39: #{tpu_custom_call.1} parent=1 // pred_check_branch
      %51 = sbr.rel (0) target = $region41
    $region40: #{tpu_custom_call.1} parent=1 // pred_region
      _
    $region41: #{tpu_custom_call.1} parent=1 // pred_fallthru
      _
    // Predicated region
    $region42: #{tpu_custom_call.1} parent=1 // pred_check
      _
    $region43: #{tpu_custom_call.1} parent=1 // pred_check_branch
      %53 = sbr.rel (0) target = $region45
    $region44: #{tpu_custom_call.1} parent=1 // pred_region
      %55 = vsyncadd [#allocation3], 0
      %s56 = sshll.u32 %s10, 4
      %s57 = int_to_ptr.hbm [resolvable:$true] %s56
      %s58 = sshll.u32 [#allocation2], 4
      %s59 = int_to_ptr.vmem [resolvable:$true] %s58
      %64 = dma.hbm_to_vmem [thread:$0]  %s57, 512, %s59, [#allocation3], 128, 128, 8
    $region45: #{tpu_custom_call.1} parent=1 // pred_fallthru
      _
    // Predicated region
    $region46: #{tpu_custom_call.1} parent=1 // pred_check
      _
    $region47: #{tpu_custom_call.1} parent=1 // pred_check_branch
      %66 = sbr.rel (0) target = $region49
    $region48: #{tpu_custom_call.1} parent=1 // pred_region
      _
    $region49: #{tpu_custom_call.1} parent=1 // pred_fallthru
      _
    // Predicated region
    $region50: #{tpu_custom_call.1} parent=1 // pred_check
      _
    $region51: #{tpu_custom_call.1} parent=1 // pred_check_branch
      %68 = sbr.rel (0) target = $region53
    $region52: #{tpu_custom_call.1} parent=1 // pred_region
      _
    $region53: #{tpu_custom_call.1} parent=1 // pred_fallthru
      _
    // Predicated region
    $region54: #{tpu_custom_call.1} parent=1 // pred_check
      _
    $region55: #{tpu_custom_call.1} parent=1 // pred_check_branch
      %70 = sbr.rel (0) target = $region57
    $region56: #{tpu_custom_call.1} parent=1 // pred_region
      _
    $region57: #{tpu_custom_call.1} parent=1 // pred_fallthru
      _
    // Predicated region
    $region58: #{tpu_custom_call.1} parent=1 // pred_check
      _
    $region59: #{tpu_custom_call.1} parent=1 // pred_check_branch
      %72 = sbr.rel (0) target = $region61
    $region60: #{tpu_custom_call.1} parent=1 // pred_region
      _
    $region61: #{tpu_custom_call.1} parent=1 // pred_fallthru
      _
    // Predicated region
    $region62: #{tpu_custom_call.1} parent=1 // pred_check
      _
    $region63: #{tpu_custom_call.1} parent=1 // pred_check_branch
      %74 = sbr.rel (0) target = $region65
    $region64: #{tpu_custom_call.1} parent=1 // pred_region
      _
    $region65: #{tpu_custom_call.1} parent=1 // pred_fallthru
      _
    // Predicated region
    $region66: #{tpu_custom_call.1} parent=1 // pred_check
      _
    $region67: #{tpu_custom_call.1} parent=1 // pred_check_branch
      %76 = sbr.rel (0) target = $region69
    $region68: #{tpu_custom_call.1} parent=1 // pred_region
      %78 = vsyncadd [#allocation6], 0
      %s79 = sshll.u32 %s16, 4
      %s80 = int_to_ptr.hbm [resolvable:$true] %s79
      %s81 = sshll.u32 [#allocation5], 4
      %s82 = int_to_ptr.vmem [resolvable:$true] %s81
      %87 = dma.hbm_to_vmem [thread:$0]  %s80, 512, %s82, [#allocation6], 128, 128, 8
    $region69: #{tpu_custom_call.1} parent=1 // pred_fallthru
      _
    // Predicated region
    $region70: #{tpu_custom_call.1} parent=1 // pred_check
      _
    $region71: #{tpu_custom_call.1} parent=1 // pred_check_branch
      %89 = sbr.rel (0) target = $region73
    $region72: #{tpu_custom_call.1} parent=1 // pred_region
      _
    $region73: #{tpu_custom_call.1} parent=1 // pred_fallthru
      _
    // Predicated region
    $region74: #{tpu_custom_call.1} parent=1 // pred_check
      _
    $region75: #{tpu_custom_call.1} parent=1 // pred_check_branch
      %91 = sbr.rel (0) target = $region77
    $region76: #{tpu_custom_call.1} parent=1 // pred_region
      _
    $region77: #{tpu_custom_call.1} parent=1 // pred_fallthru
      _
    // Predicated region
    $region78: #{tpu_custom_call.1} parent=1 // pred_check
      _
    $region79: #{tpu_custom_call.1} parent=1 // pred_check_branch
      %93 = sbr.rel (0) target = $region81
    $region80: #{tpu_custom_call.1} parent=1 // pred_region
      _
    $region81: #{tpu_custom_call.1} parent=1 // pred_fallthru
      _
    // Predicated region
    $region82: #{tpu_custom_call.1} parent=1 // pred_check
      _
    $region83: #{tpu_custom_call.1} parent=1 // pred_check_branch
      %95 = sbr.rel (0) target = $region85
    $region84: #{tpu_custom_call.1} parent=1 // pred_region
      %97 = dma.done [#allocation3], 512
    $region85: #{tpu_custom_call.1} parent=1 // pred_fallthru
      _
    // Predicated region
    $region86: #{tpu_custom_call.1} parent=1 // pred_check
      _
    $region87: #{tpu_custom_call.1} parent=1 // pred_check_branch
      %99 = sbr.rel (0) target = $region89
    $region88: #{tpu_custom_call.1} parent=1 // pred_region
      %101 = dma.done [#allocation6], 512
    $region89: #{tpu_custom_call.1} parent=1 // pred_fallthru
      _
    %v102 = vld [vmem:[%s0] sm:$0x3]
    %v103 = vld [vmem:[%s2] sm:$0xf]
    %v104 = vld [vmem:[%s3] sm:$0x1]
    %v106 = vperm.slane %v104, 0
    %vm108 = vcmask 31744
    %v110 = vsel %vm108, %v102, 0
    %vm112 = vcmask 1043456
    %v114 = vsel %vm112, %v103, 0
    %116 = vmatpush.msra.mxu0 0.0
    %117 = vmatpush.msra.mxu0 0.0
    %118 = vmatpush.msra.mxu0 0.0
    %119 = vmatpush.msra.mxu0 0.0
    %120 = vmatpush.msra.mxu0 0.0
    %121 = vmatpush.msra.mxu0 0.0
    %122 = vmatpush.msra.mxu0 0.0
    %123 = vmatpush.msra.mxu0 0.0
    %124 = vmatpush.msra.mxu0 0.0
    %125 = vmatpush.msra.mxu0 0.0
    %126 = vmatpush.msra.mxu0 0.0
    %127 = vmatpush.msra.mxu0 0.0
    %128 = vmatpush.msra.mxu0 0.0
    %129 = vmatpush.msra.mxu0 0.0
    %130 = vmatpush.msra.mxu0 0.0
    %131 = vmatpush.msra.mxu0 %v114
    %132 = vmatmul.f32.gmra.mxu0 %v110
    %v133 = vpop.f32.mrf.mxu0
    %v134 = vadd.f32 %v106, %v133
    %135 = vdwg.mxu0
    %v136 = vxor.u32 %v134, 2147483648
    %v137 = vmul.f32 %v136, 1.442695
    %v138 = vpow.pop %v137
    %v139 = vadd.f32 %v138, 1.0
    %v140 = vrcp.pop %v139
    %v141 = vmul.f32 %v139, %v140
    %v142 = vsub.f32 1.0, %v141
    %v143 = vmul.f32 %v140, %v142
    %v144 = vadd.f32 %v140, %v143
    %vm145 = vweird.f32 %v139
    %vm146 = vweird.f32 %v140
    %vm147 = vmor %vm145, %vm146
    %v148 = vsel %vm147, %v140, %v144
    %v149 = vand.u32 2147483647, %v139
    %vm150 = vcmp.eq.f32.partialorder %v149, 8.507059e+37
    %v151 = vand.u32 %v139, 2147483648
    %v152 = vor.u32 1.1754944e-38, %v151
    %v153 = vsel %vm150, %v152, %v148
    %v154 = vmul.f32 1.0, %v153
    %v155 = vmul.f32 %v134, %v154
    %v156 = vld [vmem:[%s4] sm:$0xff]
    %v157 = vld [vmem:[%s4 + $0x8] sm:$0xff]
    %v158 = vld [vmem:[%s4 + $0x10] sm:$0xff]
    %v159 = vld [vmem:[%s4 + $0x18] sm:$0xff]
    %v160 = vld [vmem:[%s5] sm:$0x1]
    %v162 = vperm.slane %v160, 0
    %vm164 = vcmask 261120
    %v166 = vsel %vm164, %v155, 0
    %168 = vmatpush.msra.mxu0 0.0
    %169 = vmatpush.msra.mxu0 0.0
    %170 = vmatpush.msra.mxu0 0.0
    %171 = vmatpush.msra.mxu0 0.0
    %172 = vmatpush.msra.mxu0 0.0
    %173 = vmatpush.msra.mxu0 0.0
    %174 = vmatpush.msra.mxu0 0.0
    %175 = vmatpush.msra.mxu0 0.0
    %176 = vmatpush.msra.mxu0 0.0
    %177 = vmatpush.msra.mxu0 0.0
    %178 = vmatpush.msra.mxu0 0.0
    %179 = vmatpush.msra.mxu0 0.0
    %180 = vmatpush.msra.mxu0 %v159
    %181 = vmatpush.msra.mxu0 %v158
    %182 = vmatpush.msra.mxu0 %v157
    %183 = vmatpush.msra.mxu0 %v156
    %184 = vmatmul.f32.gmra.mxu0 %v166
    %v185 = vpop.f32.mrf.mxu0
    %v186 = vadd.f32 %v162, %v185
    %187 = vdwg.mxu0
    %v188 = vxor.u32 %v186, 2147483648
    %v189 = vmul.f32 %v188, 1.442695
    %v190 = vpow.pop %v189
    %v191 = vadd.f32 %v190, 1.0
    %v192 = vrcp.pop %v191
    %v193 = vmul.f32 %v191, %v192
    %v194 = vsub.f32 1.0, %v193
    %v195 = vmul.f32 %v192, %v194
    %v196 = vadd.f32 %v192, %v195
    %vm197 = vweird.f32 %v191
    %vm198 = vweird.f32 %v192
    %vm199 = vmor %vm197, %vm198
    %v200 = vsel %vm199, %v192, %v196
    %v201 = vand.u32 2147483647, %v191
    %vm202 = vcmp.eq.f32.partialorder %v201, 8.507059e+37
    %v203 = vand.u32 %v191, 2147483648
    %v204 = vor.u32 1.1754944e-38, %v203
    %v205 = vsel %vm202, %v204, %v200
    %v206 = vmul.f32 1.0, %v205
    %v207 = vmul.f32 %v186, %v206
    %v208 = vld [vmem:[%s6] sm:$0xff]
    %v209 = vld [vmem:[%s6 + $0x8] sm:$0xff]
    %v210 = vld [vmem:[%s6 + $0x10] sm:$0xff]
    %v211 = vld [vmem:[%s6 + $0x18] sm:$0xff]
    %v212 = vld [vmem:[%s7] sm:$0x1]
    %v214 = vperm.slane %v212, 0
    %v217 = vsel %vm164, %v207, 0
    %219 = vmatpush.msra.mxu0 0.0
    %220 = vmatpush.msra.mxu0 0.0
    %221 = vmatpush.msra.mxu0 0.0
    %222 = vmatpush.msra.mxu0 0.0
    %223 = vmatpush.msra.mxu0 0.0
    %224 = vmatpush.msra.mxu0 0.0
    %225 = vmatpush.msra.mxu0 0.0
    %226 = vmatpush.msra.mxu0 0.0
    %227 = vmatpush.msra.mxu0 0.0
    %228 = vmatpush.msra.mxu0 0.0
    %229 = vmatpush.msra.mxu0 0.0
    %230 = vmatpush.msra.mxu0 0.0
    %231 = vmatpush.msra.mxu0 %v211
    %232 = vmatpush.msra.mxu0 %v210
    %233 = vmatpush.msra.mxu0 %v209
    %234 = vmatpush.msra.mxu0 %v208
    %235 = vmatmul.f32.gmra.mxu0 %v217
    %v236 = vpop.f32.mrf.mxu0
    %v237 = vadd.f32 %v214, %v236
    %238 = vdwg.mxu0
    %239 = vst [vmem:[#allocation7] sm:$0x3] %v237
    %p240 = scmp.eq.s32.totalorder 0, 0
    // Predicated region
    $region90: #{tpu_custom_call.1} parent=1 // pred_check
      %p241 = pneg %p240
    $region91: #{tpu_custom_call.1} parent=1 // pred_check_branch
      %243 = sbr.rel (%p241) target = $region93
    $region92: #{tpu_custom_call.1} parent=1 // pred_region
      %v244 = vld [vmem:[%s1] sm:$0x3]
      %v245 = vld [vmem:[%s8] sm:$0xf]
      %v246 = vld [vmem:[%s9] sm:$0x1]
      %v248 = vperm.slane %v246, 0
      %v251 = vsel %vm108, %v244, 0
      %v254 = vsel %vm112, %v245, 0
      %256 = vmatpush.msra.mxu0 0.0
      %257 = vmatpush.msra.mxu0 0.0
      %258 = vmatpush.msra.mxu0 0.0
      %259 = vmatpush.msra.mxu0 0.0
      %260 = vmatpush.msra.mxu0 0.0
      %261 = vmatpush.msra.mxu0 0.0
      %262 = vmatpush.msra.mxu0 0.0
      %263 = vmatpush.msra.mxu0 0.0
      %264 = vmatpush.msra.mxu0 0.0
      %265 = vmatpush.msra.mxu0 0.0
      %266 = vmatpush.msra.mxu0 0.0
      %267 = vmatpush.msra.mxu0 0.0
      %268 = vmatpush.msra.mxu0 0.0
      %269 = vmatpush.msra.mxu0 0.0
      %270 = vmatpush.msra.mxu0 0.0
      %271 = vmatpush.msra.mxu0 %v254
      %272 = vmatmul.f32.gmra.mxu0 %v251
      %v273 = vpop.f32.mrf.mxu0
      %v274 = vadd.f32 %v248, %v273
      %275 = vdwg.mxu0
      %v276 = vxor.u32 %v274, 2147483648
      %v277 = vmul.f32 %v276, 1.442695
      %v278 = vpow.pop %v277
      %v279 = vadd.f32 %v278, 1.0
      %v280 = vrcp.pop %v279
      %v281 = vmul.f32 %v279, %v280
      %v282 = vsub.f32 1.0, %v281
      %v283 = vmul.f32 %v280, %v282
      %v284 = vadd.f32 %v280, %v283
      %vm285 = vweird.f32 %v279
      %vm286 = vweird.f32 %v280
      %vm287 = vmor %vm285, %vm286
      %v288 = vsel %vm287, %v280, %v284
      %v289 = vand.u32 2147483647, %v279
      %vm290 = vcmp.eq.f32.partialorder %v289, 8.507059e+37
      %v291 = vand.u32 %v279, 2147483648
      %v292 = vor.u32 1.1754944e-38, %v291
      %v293 = vsel %vm290, %v292, %v288
      %v294 = vmul.f32 1.0, %v293
      %v295 = vmul.f32 %v274, %v294
      %v296 = vld [vmem:[#allocation2] sm:$0xff]
      %v297 = vld [vmem:[#allocation2 + $0x8] sm:$0xff]
      %v298 = vld [vmem:[#allocation2 + $0x10] sm:$0xff]
      %v299 = vld [vmem:[#allocation2 + $0x18] sm:$0xff]
      %v300 = vld [vmem:[%s11] sm:$0x1]
      %v302 = vperm.slane %v300, 0
      %v305 = vsel %vm164, %v295, 0
      %307 = vmatpush.msra.mxu0 0.0
      %308 = vmatpush.msra.mxu0 0.0
      %309 = vmatpush.msra.mxu0 0.0
      %310 = vmatpush.msra.mxu0 0.0
      %311 = vmatpush.msra.mxu0 0.0
      %312 = vmatpush.msra.mxu0 0.0
      %313 = vmatpush.msra.mxu0 0.0
      %314 = vmatpush.msra.mxu0 0.0
      %315 = vmatpush.msra.mxu0 0.0
      %316 = vmatpush.msra.mxu0 0.0
      %317 = vmatpush.msra.mxu0 0.0
      %318 = vmatpush.msra.mxu0 0.0
      %319 = vmatpush.msra.mxu0 %v299
      %320 = vmatpush.msra.mxu0 %v298
      %321 = vmatpush.msra.mxu0 %v297
      %322 = vmatpush.msra.mxu0 %v296
      %323 = vmatmul.f32.gmra.mxu0 %v305
      %v324 = vpop.f32.mrf.mxu0
      %v325 = vadd.f32 %v302, %v324
      %326 = vdwg.mxu0
      %v327 = vxor.u32 %v325, 2147483648
      %v328 = vmul.f32 %v327, 1.442695
      %v329 = vpow.pop %v328
      %v330 = vadd.f32 %v329, 1.0
      %v331 = vrcp.pop %v330
      %v332 = vmul.f32 %v330, %v331
      %v333 = vsub.f32 1.0, %v332
      %v334 = vmul.f32 %v331, %v333
      %v335 = vadd.f32 %v331, %v334
      %vm336 = vweird.f32 %v330
      %vm337 = vweird.f32 %v331
      %vm338 = vmor %vm336, %vm337
      %v339 = vsel %vm338, %v331, %v335
      %v340 = vand.u32 2147483647, %v330
      %vm341 = vcmp.eq.f32.partialorder %v340, 8.507059e+37
      %v342 = vand.u32 %v330, 2147483648
      %v343 = vor.u32 1.1754944e-38, %v342
      %v344 = vsel %vm341, %v343, %v339
      %v345 = vmul.f32 1.0, %v344
      %v346 = vmul.f32 %v325, %v345
      %v347 = vld [vmem:[%s12] sm:$0xff]
      %v348 = vld [vmem:[%s12 + $0x8] sm:$0xff]
      %v349 = vld [vmem:[%s12 + $0x10] sm:$0xff]
      %v350 = vld [vmem:[%s12 + $0x18] sm:$0xff]
      %v351 = vld [vmem:[%s13] sm:$0x1]
      %v353 = vperm.slane %v351, 0
      %v356 = vsel %vm164, %v346, 0
      %358 = vmatpush.msra.mxu0 0.0
      %359 = vmatpush.msra.mxu0 0.0
      %360 = vmatpush.msra.mxu0 0.0
      %361 = vmatpush.msra.mxu0 0.0
      %362 = vmatpush.msra.mxu0 0.0
      %363 = vmatpush.msra.mxu0 0.0
      %364 = vmatpush.msra.mxu0 0.0
      %365 = vmatpush.msra.mxu0 0.0
      %366 = vmatpush.msra.mxu0 0.0
      %367 = vmatpush.msra.mxu0 0.0
      %368 = vmatpush.msra.mxu0 0.0
      %369 = vmatpush.msra.mxu0 0.0
      %370 = vmatpush.msra.mxu0 %v350
      %371 = vmatpush.msra.mxu0 %v349
      %372 = vmatpush.msra.mxu0 %v348
      %373 = vmatpush.msra.mxu0 %v347
      %374 = vmatmul.f32.gmra.mxu0 %v356
      %v375 = vpop.f32.mrf.mxu0
      %v376 = vadd.f32 %v353, %v375
      %377 = vdwg.mxu0
      %vm378 = vcmask 123904
      %379 = vst.msk [vmem:[#allocation8] sm:$0x3] %vm378, %v376
      %v380 = vld [vmem:[%s14] sm:$0xf]
      %v381 = vld [vmem:[%s15] sm:$0x1]
      %v383 = vperm.slane %v381, 0
      %v386 = vsel %vm112, %v380, 0
      %388 = vmatpush.msra.mxu0 0.0
      %389 = vmatpush.msra.mxu0 0.0
      %390 = vmatpush.msra.mxu0 0.0
      %391 = vmatpush.msra.mxu0 0.0
      %392 = vmatpush.msra.mxu0 0.0
      %393 = vmatpush.msra.mxu0 0.0
      %394 = vmatpush.msra.mxu0 0.0
      %395 = vmatpush.msra.mxu0 0.0
      %396 = vmatpush.msra.mxu0 0.0
      %397 = vmatpush.msra.mxu0 0.0
      %398 = vmatpush.msra.mxu0 0.0
      %399 = vmatpush.msra.mxu0 0.0
      %400 = vmatpush.msra.mxu0 0.0
      %401 = vmatpush.msra.mxu0 0.0
      %402 = vmatpush.msra.mxu0 0.0
      %403 = vmatpush.msra.mxu0 %v386
      %404 = vmatmul.f32.gmra.mxu0 %v251
      %v405 = vpop.f32.mrf.mxu0
      %v406 = vadd.f32 %v383, %v405
      %407 = vdwg.mxu0
      %v408 = vxor.u32 %v406, 2147483648
      %v409 = vmul.f32 %v408, 1.442695
      %v410 = vpow.pop %v409
      %v411 = vadd.f32 %v410, 1.0
      %v412 = vrcp.pop %v411
      %v413 = vmul.f32 %v411, %v412
      %v414 = vsub.f32 1.0, %v413
      %v415 = vmul.f32 %v412, %v414
      %v416 = vadd.f32 %v412, %v415
      %vm417 = vweird.f32 %v411
      %vm418 = vweird.f32 %v412
      %vm419 = vmor %vm417, %vm418
      %v420 = vsel %vm419, %v412, %v416
      %v421 = vand.u32 2147483647, %v411
      %vm422 = vcmp.eq.f32.partialorder %v421, 8.507059e+37
      %v423 = vand.u32 %v411, 2147483648
      %v424 = vor.u32 1.1754944e-38, %v423
      %v425 = vsel %vm422, %v424, %v420
      %v426 = vmul.f32 1.0, %v425
      %v427 = vmul.f32 %v406, %v426
      %v428 = vld [vmem:[#allocation5] sm:$0xff]
      %v429 = vld [vmem:[#allocation5 + $0x8] sm:$0xff]
      %v430 = vld [vmem:[#allocation5 + $0x10] sm:$0xff]
      %v431 = vld [vmem:[#allocation5 + $0x18] sm:$0xff]
      %v432 = vld [vmem:[%s17] sm:$0x1]
      %v434 = vperm.slane %v432, 0
      %v437 = vsel %vm164, %v427, 0
      %439 = vmatpush.msra.mxu0 0.0
      %440 = vmatpush.msra.mxu0 0.0
      %441 = vmatpush.msra.mxu0 0.0
      %442 = vmatpush.msra.mxu0 0.0
      %443 = vmatpush.msra.mxu0 0.0
      %444 = vmatpush.msra.mxu0 0.0
      %445 = vmatpush.msra.mxu0 0.0
      %446 = vmatpush.msra.mxu0 0.0
      %447 = vmatpush.msra.mxu0 0.0
      %448 = vmatpush.msra.mxu0 0.0
      %449 = vmatpush.msra.mxu0 0.0
      %450 = vmatpush.msra.mxu0 0.0
      %451 = vmatpush.msra.mxu0 %v431
      %452 = vmatpush.msra.mxu0 %v430
      %453 = vmatpush.msra.mxu0 %v429
      %454 = vmatpush.msra.mxu0 %v428
      %455 = vmatmul.f32.gmra.mxu0 %v437
      %v456 = vpop.f32.mrf.mxu0
      %v457 = vadd.f32 %v434, %v456
      %458 = vdwg.mxu0
      %v459 = vxor.u32 %v457, 2147483648
      %v460 = vmul.f32 %v459, 1.442695
      %v461 = vpow.pop %v460
      %v462 = vadd.f32 %v461, 1.0
      %v463 = vrcp.pop %v462
      %v464 = vmul.f32 %v462, %v463
      %v465 = vsub.f32 1.0, %v464
      %v466 = vmul.f32 %v463, %v465
      %v467 = vadd.f32 %v463, %v466
      %vm468 = vweird.f32 %v462
      %vm469 = vweird.f32 %v463
      %vm470 = vmor %vm468, %vm469
      %v471 = vsel %vm470, %v463, %v467
      %v472 = vand.u32 2147483647, %v462
      %vm473 = vcmp.eq.f32.partialorder %v472, 8.507059e+37
      %v474 = vand.u32 %v462, 2147483648
      %v475 = vor.u32 1.1754944e-38, %v474
      %v476 = vsel %vm473, %v475, %v471
      %v477 = vmul.f32 1.0, %v476
      %v478 = vmul.f32 %v457, %v477
      %v479 = vld [vmem:[%s18] sm:$0xff]
      %v480 = vld [vmem:[%s18 + $0x8] sm:$0xff]
      %v481 = vld [vmem:[%s18 + $0x10] sm:$0xff]
      %v482 = vld [vmem:[%s18 + $0x18] sm:$0xff]
      %v483 = vld [vmem:[%s19] sm:$0x1]
      %v485 = vperm.slane %v483, 0
      %v488 = vsel %vm164, %v478, 0
      %490 = vmatpush.msra.mxu0 0.0
      %491 = vmatpush.msra.mxu0 0.0
      %492 = vmatpush.msra.mxu0 0.0
      %493 = vmatpush.msra.mxu0 0.0
      %494 = vmatpush.msra.mxu0 0.0
      %495 = vmatpush.msra.mxu0 0.0
      %496 = vmatpush.msra.mxu0 0.0
      %497 = vmatpush.msra.mxu0 0.0
      %498 = vmatpush.msra.mxu0 0.0
      %499 = vmatpush.msra.mxu0 0.0
      %500 = vmatpush.msra.mxu0 0.0
      %501 = vmatpush.msra.mxu0 0.0
      %502 = vmatpush.msra.mxu0 %v482
      %503 = vmatpush.msra.mxu0 %v481
      %504 = vmatpush.msra.mxu0 %v480
      %505 = vmatpush.msra.mxu0 %v479
      %506 = vmatmul.f32.gmra.mxu0 %v488
      %v507 = vpop.f32.mrf.mxu0
      %v508 = vadd.f32 %v485, %v507
      %509 = vdwg.mxu0
      %510 = vst.msk [vmem:[#allocation10] sm:$0x3] %vm378, %v508
    $region93: #{tpu_custom_call.1} parent=1 // pred_fallthru
      _
    // Predicated region
    $region94: #{tpu_custom_call.1} parent=1 // pred_check
      _
    $region95: #{tpu_custom_call.1} parent=1 // pred_check_branch
      %512 = sbr.rel (0) target = $region97
    $region96: #{tpu_custom_call.1} parent=1 // pred_region
      %514 = vsyncadd [#allocation4], 0
      %s516 = sshll.u32 [#allocation7], 4
      %s517 = int_to_ptr.vmem [resolvable:$true] %s516
      %s518 = sshll.u32 %s20, 4
      %s519 = int_to_ptr.hbm [resolvable:$true] %s518
      %521 = dma.vmem_to_hbm [thread:$0]  %s517, 32, %s519, [#allocation4]
    $region97: #{tpu_custom_call.1} parent=1 // pred_fallthru
      _
    // Predicated region
    $region98: #{tpu_custom_call.1} parent=1 // pred_check
      _
    $region99: #{tpu_custom_call.1} parent=1 // pred_check_branch
      %523 = sbr.rel (0) target = $region101
    $region100: #{tpu_custom_call.1} parent=1 // pred_region
      %525 = vsyncadd [#allocation9], 0
      %s527 = sshll.u32 [#allocation8], 4
      %s528 = int_to_ptr.vmem [resolvable:$true] %s527
      %s529 = sshll.u32 %s21, 4
      %s530 = int_to_ptr.hbm [resolvable:$true] %s529
      %532 = dma.vmem_to_hbm [thread:$0]  %s528, 32, %s530, [#allocation9]
    $region101: #{tpu_custom_call.1} parent=1 // pred_fallthru
      _
    // Predicated region
    $region102: #{tpu_custom_call.1} parent=1 // pred_check
      _
    $region103: #{tpu_custom_call.1} parent=1 // pred_check_branch
      %534 = sbr.rel (0) target = $region105
    $region104: #{tpu_custom_call.1} parent=1 // pred_region
      %536 = vsyncadd [#allocation9], 0
      %s538 = sshll.u32 [#allocation10], 4
      %s539 = int_to_ptr.vmem [resolvable:$true] %s538
      %s540 = sshll.u32 %s22, 4
      %s541 = int_to_ptr.hbm [resolvable:$true] %s540
      %543 = dma.vmem_to_hbm [thread:$0]  %s539, 32, %s541, [#allocation9]
    $region105: #{tpu_custom_call.1} parent=1 // pred_fallthru
      _
    // Predicated region
    $region106: #{tpu_custom_call.1} parent=1 // pred_check
      _
    $region107: #{tpu_custom_call.1} parent=1 // pred_check_branch
      %545 = sbr.rel (0) target = $region109
    $region108: #{tpu_custom_call.1} parent=1 // pred_region
      %547 = dma.done [#allocation4], 32
    $region109: #{tpu_custom_call.1} parent=1 // pred_fallthru
      _
    // Predicated region
    $region110: #{tpu_custom_call.1} parent=1 // pred_check
      _
    $region111: #{tpu_custom_call.1} parent=1 // pred_check_branch
      %549 = sbr.rel (0) target = $region113
    $region112: #{tpu_custom_call.1} parent=1 // pred_region
      %551 = dma.done [#allocation9], 32
    $region113: #{tpu_custom_call.1} parent=1 // pred_fallthru
      _
    // Predicated region
    $region114: #{tpu_custom_call.1} parent=1 // pred_check
      _
    $region115: #{tpu_custom_call.1} parent=1 // pred_check_branch
      %553 = sbr.rel (0) target = $region117
    $region116: #{tpu_custom_call.1} parent=1 // pred_region
      %555 = dma.done [#allocation9], 32
    $region117: #{tpu_custom_call.1} parent=1 // pred_fallthru
      _
    %556 = vsyncpa [#allocation3], 1
    %557 = vsyncpa [#allocation6], 1
    %558 = vsyncpa [#allocation4], 1
    %559 = vsyncpa [#allocation9], 1

</llo_original>
